<compile_context>
chip_gen: v7x
topology: tpu7x:2x2x1
jax: 0.10.0
libtpu: 0.0.40
codegen_flags: <defaults>
</compile_context>

<pallas_src>
import functools

import jax
import jax.numpy as jnp
import numpy as np
from jax.experimental import pallas as pl
from jax.experimental.pallas import tpu as pltpu


# --------------------------------- kernel ------------------------------------

def patch_embed_kernel(eps, inv_d, xp_ref, w_ref, b_ref, g_ref, beta_ref, o_ref):
    # xp_ref: (TM, P) bf16   w_ref: (P, D) bf16
    # b/g/beta: (1, D) f32   o_ref: (TM, D) bf16
    y = jnp.dot(xp_ref[...], w_ref[...], preferred_element_type=jnp.float32)
    y = y + b_ref[...]
    # Single-pass LayerNorm statistics in f32: var = E[y^2] - E[y]^2.
    s1 = jnp.sum(y, axis=-1, keepdims=True)
    s2 = jnp.sum(y * y, axis=-1, keepdims=True)
    mean = s1 * inv_d
    var = s2 * inv_d - mean * mean
    scale = jax.lax.rsqrt(var + eps) * g_ref[...]        # gamma folded into scale
    o_ref[...] = ((y - mean) * scale + beta_ref[...]).astype(o_ref.dtype)


# ---------------------------------- glue --------------------------------------

def _round_up(v, m):
    return -(-v // m) * m


def _im2col_bf16(x, k, stride, pad):
    """NCHW f32 -> (B*N, C*k*k) bf16 patches ordered (C, kh, kw), matching
    Conv2d.weight.reshape(D, C*k*k). All data movement happens in bf16."""
    B, C, H, W = x.shape
    Ho = (H + 2 * pad - k) // stride + 1
    Wo = (W + 2 * pad - k) // stride + 1
    xb = x.astype(jnp.bfloat16)                          # cast once, up front
    xp = jnp.pad(xb, ((0, 0), (0, 0), (pad, pad), (pad, pad)))
    cols = []
    for di in range(k):
        for dj in range(k):
            cols.append(xp[:, :,
                           di:di + (Ho - 1) * stride + 1:stride,
                           dj:dj + (Wo - 1) * stride + 1:stride])   # (B, C, Ho, Wo)
    patches = jnp.stack(cols, axis=2)                    # (B, C, k*k, Ho, Wo)
    patches = patches.reshape(B, C * k * k, Ho, Wo)      # channel-major (C, kh, kw)
    patches = patches.transpose(0, 2, 3, 1).reshape(B * Ho * Wo, C * k * k)
    return patches, Ho, Wo


def patch_embed_forward(x, params, *, patch_size, kernel_size=3, overlap=True,
                        eps=1e-5, tile_m=1024):
    B, C, H, W = x.shape
    if overlap:
        k, stride, pad = kernel_size, patch_size, kernel_size // 2
    else:
        k, stride, pad = patch_size, patch_size, 0

    xp, Ho, Wo = _im2col_bf16(x, k, stride, pad)         # (M, P) bf16
    N = Ho * Wo
    M, P = xp.shape
    w = params["w"]                                      # (P, D) bf16 (cast at init)
    D = w.shape[1]

    # Row tiling: multiple of 16 (bf16 sublane packing). Cap at ceil(M/2) so there
    # are >= 2 tiles whenever possible (feeds both v7x TensorCores); ragged tail
    # blocks are handled by Pallas masking, so no host-side pad/slice is needed.
    tm = max(16, min(tile_m, _round_up(pl.cdiv(M, 2), 16)))
    grid = (pl.cdiv(M, tm),)

    out = pl.pallas_call(
        functools.partial(patch_embed_kernel, eps, 1.0 / D),
        grid=grid,
        in_specs=[
            pl.BlockSpec((tm, P), lambda i: (i, 0)),     # patch rows, tiled over M
            pl.BlockSpec((P, D), lambda i: (0, 0)),      # projection weight (grid-invariant)
            pl.BlockSpec((1, D), lambda i: (0, 0)),      # conv bias
            pl.BlockSpec((1, D), lambda i: (0, 0)),      # LayerNorm gamma
            pl.BlockSpec((1, D), lambda i: (0, 0)),      # LayerNorm beta
        ],
        out_specs=pl.BlockSpec((tm, D), lambda i: (i, 0)),
        out_shape=jax.ShapeDtypeStruct((M, D), jnp.bfloat16),   # bf16 tokens: halves writeback
        compiler_params=pltpu.CompilerParams(
            dimension_semantics=("parallel",)),
    )(xp, w, params["b"], params["g"], params["beta"])

    tokens = out.reshape(B, N, D)
    return tokens, (Ho, Wo)


# ------------------------------ parameter init --------------------------------

def init_params(key, *, in_chans, kernel_size, embed_dim):
    P = in_chans * kernel_size * kernel_size
    kw, kb = jax.random.split(key)
    bound = 1.0 / np.sqrt(P)                     # PyTorch Conv2d default init bound
    conv_w = jax.random.uniform(kw, (embed_dim, in_chans, kernel_size, kernel_size),
                                jnp.float32, -bound, bound)
    conv_b = jax.random.uniform(kb, (embed_dim,), jnp.float32, -bound, bound)
    return {
        "conv_w": conv_w,                                          # (D, C, k, k) for reference
        "w": conv_w.reshape(embed_dim, P).T.astype(jnp.bfloat16),  # (P, D) bf16 for the kernel
        "b": conv_b.reshape(1, embed_dim),
        "g": jnp.ones((1, embed_dim), jnp.float32),                # LayerNorm weight
        "beta": jnp.zeros((1, embed_dim), jnp.float32),            # LayerNorm bias
    }


# --------------------------- pure-JAX reference -------------------------------

def reference_forward(x, params, *, patch_size, kernel_size=3, overlap=True, eps=1e-5):
    if overlap:
        stride, pad = patch_size, kernel_size // 2
    else:
        stride, pad = patch_size, 0
    y = jax.lax.conv_general_dilated(
        x, params["conv_w"], window_strides=(stride, stride),
        padding=((pad, pad), (pad, pad)),
        dimension_numbers=("NCHW", "OIHW", "NCHW"))
    y = y + params["b"].reshape(1, -1, 1, 1)
    B, D, Ho, Wo = y.shape
    t = y.reshape(B, D, Ho * Wo).transpose(0, 2, 1)
    mean = t.mean(-1, keepdims=True)
    var = ((t - mean) ** 2).mean(-1, keepdims=True)
    t = (t - mean) / jnp.sqrt(var + eps) * params["g"] + params["beta"]
    return t, (Ho, Wo)


# ----------------------------------- main --------------------------------------

if __name__ == "__main__":
    # Small config consistent with PatchEmbed defaults (overlap=True, k=3):
    #   batch=2, in_chans=4, img_size=16, patch_size=4 -> 16 tokens; embed_dim=128.
    B, C, H, W = 2, 4, 16, 16
    patch_size = 4
    kernel_size = 3
    embed_dim = 128

    key = jax.random.PRNGKey(0)
    k_x, k_p = jax.random.split(key)
    x = jax.random.normal(k_x, (B, C, H, W), jnp.float32)
    params = init_params(k_p, in_chans=C, kernel_size=kernel_size, embed_dim=embed_dim)

    tokens, (Ho, Wo) = patch_embed_forward(
        x, params, patch_size=patch_size, kernel_size=kernel_size, overlap=True)
    tokens = jax.block_until_ready(tokens)

    N = (H // patch_size) * (W // patch_size)
    assert tokens.shape == (B, N, embed_dim), tokens.shape
    assert tokens.dtype == jnp.bfloat16, tokens.dtype
    assert (Ho, Wo) == (H // patch_size, W // patch_size), (Ho, Wo)
    assert bool(jnp.all(jnp.isfinite(tokens.astype(jnp.float32))))

    # Validate against a pure-JAX f32 reference (loose tol: bf16 matmul inputs and
    # bf16 token output vs an all-f32 reference).
    ref, _ = reference_forward(x, params, patch_size=patch_size,
                               kernel_size=kernel_size, overlap=True)
    err = float(jnp.max(jnp.abs(tokens.astype(jnp.float32) - ref)))
    assert err < 1e-1, f"max abs err {err}"

    print("KERNEL_OK")
</pallas_src>

<mosaic_0001>
module attributes {stable_mosaic.version = 11 : i64} {
  func.func @patch_embed_kernel(%arg0: i32, %arg1: memref<16x36xbf16, #tpu.memory_space<vmem>>, %arg2: memref<36x128xbf16, #tpu.memory_space<vmem>>, %arg3: memref<1x128xf32, #tpu.memory_space<vmem>>, %arg4: memref<1x128xf32, #tpu.memory_space<vmem>>, %arg5: memref<1x128xf32, #tpu.memory_space<vmem>>, %arg6: memref<16x128xbf16, #tpu.memory_space<vmem>>) attributes {dimension_semantics = [#tpu.dimension_semantics<parallel>], iteration_bounds = array<i64: 2>, scalar_prefetch = 0 : i64, scratch_operands = 0 : i64, tpu.core_type = #tpu.core_type<tc>, window_params = [{transform_indices = @transform_0, window_bounds = array<i64: 16, 36>}, {pipeline_mode = #tpu.pipeline_mode<synchronous>, transform_indices = @transform_1, window_bounds = array<i64: 36, 128>}, {pipeline_mode = #tpu.pipeline_mode<synchronous>, transform_indices = @transform_2, window_bounds = array<i64: 1, 128>}, {pipeline_mode = #tpu.pipeline_mode<synchronous>, transform_indices = @transform_3, window_bounds = array<i64: 1, 128>}, {pipeline_mode = #tpu.pipeline_mode<synchronous>, transform_indices = @transform_4, window_bounds = array<i64: 1, 128>}, {transform_indices = @transform_5, window_bounds = array<i64: 16, 128>}]} {
    %c0 = arith.constant 0 : index
    %c0_0 = arith.constant 0 : index
    %0 = vector.load %arg1[%c0, %c0_0] : memref<16x36xbf16, #tpu.memory_space<vmem>>, vector<16x36xbf16>
    %c0_1 = arith.constant 0 : index
    %c0_2 = arith.constant 0 : index
    %1 = vector.load %arg2[%c0_1, %c0_2] : memref<36x128xbf16, #tpu.memory_space<vmem>>, vector<36x128xbf16>
    %cst = arith.constant dense<0.000000e+00> : vector<16x128xf32>
    %2 = tpu.matmul %0, %1, %cst {dimension_numbers = #tpu.dot_dimension_numbers<[1], [0], [0], [1], [0, 0, 1, 1], [], []>} : vector<16x36xbf16>, vector<36x128xbf16>, vector<16x128xf32> -> vector<16x128xf32>
    %c0_3 = arith.constant 0 : index
    %c0_4 = arith.constant 0 : index
    %3 = vector.load %arg3[%c0_3, %c0_4] : memref<1x128xf32, #tpu.memory_space<vmem>>, vector<1x128xf32>
    %4 = vector.broadcast %3 : vector<1x128xf32> to vector<16x128xf32>
    %5 = arith.addf %2, %4 : vector<16x128xf32>
    %cst_5 = arith.constant dense<0.000000e+00> : vector<16xf32>
    %6 = vector.multi_reduction <add>, %5, %cst_5 [1] : vector<16x128xf32> to vector<16xf32>
    %7 = vector.shape_cast %6 : vector<16xf32> to vector<16x1xf32>
    %8 = arith.mulf %5, %5 : vector<16x128xf32>
    %cst_6 = arith.constant dense<0.000000e+00> : vector<16xf32>
    %9 = vector.multi_reduction <add>, %8, %cst_6 [1] : vector<16x128xf32> to vector<16xf32>
    %10 = vector.shape_cast %9 : vector<16xf32> to vector<16x1xf32>
    %cst_7 = arith.constant 7.812500e-03 : f32
    %11 = vector.broadcast %cst_7 : f32 to vector<16x1xf32>
    %12 = arith.mulf %7, %11 : vector<16x1xf32>
    %cst_8 = arith.constant 7.812500e-03 : f32
    %13 = vector.broadcast %cst_8 : f32 to vector<16x1xf32>
    %14 = arith.mulf %10, %13 : vector<16x1xf32>
    %15 = arith.mulf %12, %12 : vector<16x1xf32>
    %16 = arith.subf %14, %15 : vector<16x1xf32>
    %cst_9 = arith.constant 9.99999974E-6 : f32
    %17 = vector.broadcast %cst_9 : f32 to vector<16x1xf32>
    %18 = arith.addf %16, %17 : vector<16x1xf32>
    %19 = math.rsqrt %18 : vector<16x1xf32>
    %c0_10 = arith.constant 0 : index
    %c0_11 = arith.constant 0 : index
    %20 = vector.load %arg4[%c0_10, %c0_11] : memref<1x128xf32, #tpu.memory_space<vmem>>, vector<1x128xf32>
    %21 = vector.broadcast %19 : vector<16x1xf32> to vector<16x128xf32>
    %22 = vector.broadcast %20 : vector<1x128xf32> to vector<16x128xf32>
    %23 = arith.mulf %21, %22 : vector<16x128xf32>
    %24 = vector.broadcast %12 : vector<16x1xf32> to vector<16x128xf32>
    %25 = arith.subf %5, %24 : vector<16x128xf32>
    %26 = arith.mulf %25, %23 : vector<16x128xf32>
    %c0_12 = arith.constant 0 : index
    %c0_13 = arith.constant 0 : index
    %27 = vector.load %arg5[%c0_12, %c0_13] : memref<1x128xf32, #tpu.memory_space<vmem>>, vector<1x128xf32>
    %28 = vector.broadcast %27 : vector<1x128xf32> to vector<16x128xf32>
    %29 = arith.addf %26, %28 : vector<16x128xf32>
    %30 = arith.truncf %29 : vector<16x128xf32> to vector<16x128xbf16>
    %c0_14 = arith.constant 0 : index
    %c0_15 = arith.constant 0 : index
    %31 = vector.load %arg6[%c0_14, %c0_15] : memref<16x128xbf16, #tpu.memory_space<vmem>>, vector<16x128xbf16>
    tpu.vector_store %arg6[%c0_14, %c0_15], %30 {strides = array<i32>} : memref<16x128xbf16, #tpu.memory_space<vmem>>, vector<16x128xbf16>,
    return
  }
  func.func @transform_0(%arg0: i32) -> (i32, i32) {
    %c0_i32 = arith.constant 0 : i32
    %c0_i32_0 = arith.constant 0 : i32
    return %arg0, %c0_i32 : i32, i32
  }
  func.func @transform_1(%arg0: i32) -> (i32, i32) {
    %c0_i32 = arith.constant 0 : i32
    %c0_i32_0 = arith.constant 0 : i32
    %c0_i32_1 = arith.constant 0 : i32
    return %c0_i32, %c0_i32_0 : i32, i32
  }
  func.func @transform_2(%arg0: i32) -> (i32, i32) {
    %c0_i32 = arith.constant 0 : i32
    %c0_i32_0 = arith.constant 0 : i32
    %c0_i32_1 = arith.constant 0 : i32
    return %c0_i32, %c0_i32_0 : i32, i32
  }
  func.func @transform_3(%arg0: i32) -> (i32, i32) {
    %c0_i32 = arith.constant 0 : i32
    %c0_i32_0 = arith.constant 0 : i32
    %c0_i32_1 = arith.constant 0 : i32
    return %c0_i32, %c0_i32_0 : i32, i32
  }
  func.func @transform_4(%arg0: i32) -> (i32, i32) {
    %c0_i32 = arith.constant 0 : i32
    %c0_i32_0 = arith.constant 0 : i32
    %c0_i32_1 = arith.constant 0 : i32
    return %c0_i32, %c0_i32_0 : i32, i32
  }
  func.func @transform_5(%arg0: i32) -> (i32, i32) {
    %c0_i32 = arith.constant 0 : i32
    %c0_i32_0 = arith.constant 0 : i32
    return %arg0, %c0_i32 : i32, i32
  }
}

</mosaic_0001>

<llo_original>
// kernel: tpu_custom_call.1
$region0: #{tpu_custom_call.1}
  #allocation0 [shape = 'u32[]', space=smem, size = 0x4, offset = 0x4, fixed_abs, tag = 'smem constant byte address 0x4 - core index']
  #allocation1 [shape = 'u32[144,128]{1,0:T(1,128)}', space=vmem, size = 0x12000, scoped, tag = 'internal scratch']
  %s0 = inlined_call_operand.hbm [shape: bf16[32,36], index: 0, kind: input, shape index: {}]
  %s1 = inlined_call_operand.hbm [shape: bf16[36,128], index: 1, kind: input, shape index: {}]
  %s2 = inlined_call_operand.vmem [shape: f32[1,128], index: 2, kind: input, shape index: {}]
  %s3 = inlined_call_operand.vmem [shape: f32[1,128], index: 3, kind: input, shape index: {}]
  %s4 = inlined_call_operand.vmem [shape: f32[1,128], index: 4, kind: input, shape index: {}]
  %s5 = inlined_call_operand.hbm [shape: bf16[32,128], index: 5, kind: output, shape index: {}]
  %s6 = sld [smem:[#allocation0]]
  $region61: #{tpu_custom_call.1} parent=0
    _
  %s8 = ssub.s32 1, %s6
  %s9 = scalar_select 0, %s8, %s6
  $region1: #{tpu_custom_call.1} parent=0
    #allocation2 [shape = 'u8[8192]{0}', space=vmem, size = 0x2000, scoped, tag = 'input window, operand 0']
    #allocation3 [shape = 's32[2]{0}', space=sflag, size = 0x8, scoped, tag = 'scoped memory for tpu_custom_call.1']
    #allocation4 [shape = 's32[2]{0}', space=sflag, size = 0x8, scoped, tag = 'scoped memory for tpu_custom_call.1']
    #allocation5 [shape = 'u8[10240]{0}', space=vmem, size = 0x2800, scoped, tag = 'input window, operand 1, single buffered']
    #allocation6 [shape = 's32[1]{0}', space=sflag, size = 0x4, scoped, tag = 'scoped memory for tpu_custom_call.1']
    #allocation7 [shape = 'u8[8192]{0}', space=vmem, size = 0x2000, scoped, tag = 'output window, operand 0']
    %10 = vsyncpa [#allocation3], 0
    %s11 = scalar_lea.sflag [#allocation3], 1
    %12 = vsyncpa %s11, 0
    %13 = vsyncpa [#allocation6], 0
    %14 = vsyncpa [#allocation4], 0
    %s15 = scalar_lea.sflag [#allocation4], 1
    %16 = vsyncpa %s15, 0
    loop: start=0, step=1, limit=4
    $region2: #{tpu_custom_call.1} parent=1 // loop_pre_header
      _
    $region3: #{tpu_custom_call.1} parent=1 // loop_header
      %s18 = sphi 0, %s22
      %p19 = scmp.ge.s32.totalorder %s18, 4
      %s28 = sphi 0, %s30
      %s31 = sphi 0, %s28
      %s32 = sphi 0, %s31
      %s48 = sphi 0, %s32
      %s52 = sphi 0, %s52
      %s54 = sphi 0, %s52
      %s55 = sphi 0, %s54
      %s69 = sphi 0, %s55
      %s73 = sphi 0, %s73
      %s75 = sphi 0, %s73
      %s76 = sphi 0, %s75
      %s90 = sphi 0, %s76
      %s94 = sphi 0, %s94
      %s96 = sphi 0, %s94
      %s97 = sphi 0, %s96
      %s111 = sphi 0, %s97
      %s115 = sphi 0, %s115
      %s117 = sphi 0, %s115
      %s118 = sphi 0, %s117
      %s132 = sphi 0, %s118
      %s138 = sphi 0, %s140
      %s141 = sphi 0, %s138
      %s142 = sphi 0, %s141
      %s158 = sphi 0, %s142
    $region4: #{tpu_custom_call.1} parent=1 // loop_header_branch
      %21 = sbr.rel (%p19) target = $region8
    $region5: #{tpu_custom_call.1} parent=1 // loop_body
      %s23 = ssub.s32 %s18, 1
      %s24 = ssub.s32 %s18, 2
      %s25 = sadd.s32 %s18, 1
      %s26 = ssub.s32 %s18, %s25
      %p27 = scmp.eq.s32.totalorder %s26, 0
      %s29 = sadd.s32 %s28, 1
      %s30 = scalar_select %p27, %s28, %s29
      %p33 = pneg %p27
      %p34 = scmp.eq.s32.totalorder %s18, 1
      %p35 = por %p33, %p34
      %p36 = scmp.ne.s32.totalorder %s28, %s31
      %p37 = scmp.eq.s32.totalorder %s18, 0
      %p38 = por %p36, %p37
      %p39 = scmp.ne.s32.totalorder %s28, %s31
      %p40 = scmp.eq.s32.totalorder %s23, 1
      %p41 = por %p39, %p40
      %p42 = scmp.ne.s32.totalorder %s31, %s32
      %p43 = scmp.eq.s32.totalorder %s23, 0
      %p44 = por %p42, %p43
      %p45 = scmp.ne.s32.totalorder %s31, %s32
      %p46 = scmp.eq.s32.totalorder %s24, 1
      %p47 = por %p45, %p46
      %p49 = scmp.ne.s32.totalorder %s32, %s48
      %p50 = scmp.eq.s32.totalorder %s24, 0
      %p51 = por %p49, %p50
      %s53 = sadd.s32 %s52, 1
      %p56 = scmp.eq.s32.totalorder %s18, 1
      %p57 = scmp.ne.s32.totalorder %s52, %s54
      %p58 = scmp.eq.s32.totalorder %s18, 0
      %p59 = por %p57, %p58
      %p60 = scmp.ne.s32.totalorder %s52, %s54
      %p61 = scmp.eq.s32.totalorder %s23, 1
      %p62 = por %p60, %p61
      %p63 = scmp.ne.s32.totalorder %s54, %s55
      %p64 = scmp.eq.s32.totalorder %s23, 0
      %p65 = por %p63, %p64
      %p66 = scmp.ne.s32.totalorder %s54, %s55
      %p67 = scmp.eq.s32.totalorder %s24, 1
      %p68 = por %p66, %p67
      %p70 = scmp.ne.s32.totalorder %s55, %s69
      %p71 = scmp.eq.s32.totalorder %s24, 0
      %p72 = por %p70, %p71
      %s74 = sadd.s32 %s73, 1
      %p77 = scmp.eq.s32.totalorder %s18, 1
      %p78 = scmp.ne.s32.totalorder %s73, %s75
      %p79 = scmp.eq.s32.totalorder %s18, 0
      %p80 = por %p78, %p79
      %p81 = scmp.ne.s32.totalorder %s73, %s75
      %p82 = scmp.eq.s32.totalorder %s23, 1
      %p83 = por %p81, %p82
      %p84 = scmp.ne.s32.totalorder %s75, %s76
      %p85 = scmp.eq.s32.totalorder %s23, 0
      %p86 = por %p84, %p85
      %p87 = scmp.ne.s32.totalorder %s75, %s76
      %p88 = scmp.eq.s32.totalorder %s24, 1
      %p89 = por %p87, %p88
      %p91 = scmp.ne.s32.totalorder %s76, %s90
      %p92 = scmp.eq.s32.totalorder %s24, 0
      %p93 = por %p91, %p92
      %s95 = sadd.s32 %s94, 1
      %p98 = scmp.eq.s32.totalorder %s18, 1
      %p99 = scmp.ne.s32.totalorder %s94, %s96
      %p100 = scmp.eq.s32.totalorder %s18, 0
      %p101 = por %p99, %p100
      %p102 = scmp.ne.s32.totalorder %s94, %s96
      %p103 = scmp.eq.s32.totalorder %s23, 1
      %p104 = por %p102, %p103
      %p105 = scmp.ne.s32.totalorder %s96, %s97
      %p106 = scmp.eq.s32.totalorder %s23, 0
      %p107 = por %p105, %p106
      %p108 = scmp.ne.s32.totalorder %s96, %s97
      %p109 = scmp.eq.s32.totalorder %s24, 1
      %p110 = por %p108, %p109
      %p112 = scmp.ne.s32.totalorder %s97, %s111
      %p113 = scmp.eq.s32.totalorder %s24, 0
      %p114 = por %p112, %p113
      %s116 = sadd.s32 %s115, 1
      %p119 = scmp.eq.s32.totalorder %s18, 1
      %p120 = scmp.ne.s32.totalorder %s115, %s117
      %p121 = scmp.eq.s32.totalorder %s18, 0
      %p122 = por %p120, %p121
      %p123 = scmp.ne.s32.totalorder %s115, %s117
      %p124 = scmp.eq.s32.totalorder %s23, 1
      %p125 = por %p123, %p124
      %p126 = scmp.ne.s32.totalorder %s117, %s118
      %p127 = scmp.eq.s32.totalorder %s23, 0
      %p128 = por %p126, %p127
      %p129 = scmp.ne.s32.totalorder %s117, %s118
      %p130 = scmp.eq.s32.totalorder %s24, 1
      %p131 = por %p129, %p130
      %p133 = scmp.ne.s32.totalorder %s118, %s132
      %p134 = scmp.eq.s32.totalorder %s24, 0
      %p135 = por %p133, %p134
      %s136 = ssub.s32 %s18, %s25
      %p137 = scmp.eq.s32.totalorder %s136, 0
      %s139 = sadd.s32 %s138, 1
      %s140 = scalar_select %p137, %s138, %s139
      %p143 = pneg %p137
      %p144 = scmp.eq.s32.totalorder %s18, 1
      %p145 = por %p143, %p144
      %p146 = scmp.ne.s32.totalorder %s138, %s141
      %p147 = scmp.eq.s32.totalorder %s18, 0
      %p148 = por %p146, %p147
      %p149 = scmp.ne.s32.totalorder %s138, %s141
      %p150 = scmp.eq.s32.totalorder %s23, 1
      %p151 = por %p149, %p150
      %p152 = scmp.ne.s32.totalorder %s141, %s142
      %p153 = scmp.eq.s32.totalorder %s23, 0
      %p154 = por %p152, %p153
      %p155 = scmp.ne.s32.totalorder %s141, %s142
      %p156 = scmp.eq.s32.totalorder %s24, 1
      %p157 = por %p155, %p156
      %p159 = scmp.ne.s32.totalorder %s142, %s158
      %p160 = scmp.eq.s32.totalorder %s24, 0
      %p161 = por %p159, %p160
      %p162 = scmp.le.s32.totalorder 1, %s18
      %p163 = scmp.lt.s32.totalorder %s18, 3
      %p164 = pnand %p162, %p163
      %p165 = pneg %p164
      // Predicated region
      $region9: #{tpu_custom_call.1} parent=5 // pred_check
        _
      $region10: #{tpu_custom_call.1} parent=5 // pred_check_branch
        %167 = sbr.rel (%p164) target = $region12
      $region11: #{tpu_custom_call.1} parent=5 // pred_region
        %s168 = ssub.s32 %s18, 1
        // Predicated region
        $region13: #{tpu_custom_call.1} parent=11 // pred_check
          %p169 = pneg %p65
        $region14: #{tpu_custom_call.1} parent=11 // pred_check_branch
          %171 = sbr.rel (%p169) target = $region16
        $region15: #{tpu_custom_call.1} parent=11 // pred_region
          %s173 = ssub.s32 320, 320
          %174 = vsyncadd [#allocation6], %s173
          %s175 = sshll.u32 [#allocation5], 4
          %s176 = int_to_ptr.vmem [resolvable:$true] %s175
          %181 = dma.hbm_to_vmem [thread:$0]  %s1, 320, %s176, [#allocation6], 64, 64, 4
        $region16: #{tpu_custom_call.1} parent=11 // pred_fallthru
          _
        // Predicated region
        $region17: #{tpu_custom_call.1} parent=11 // pred_check
          %p182 = pneg %p86
        $region18: #{tpu_custom_call.1} parent=11 // pred_check_branch
          %184 = sbr.rel (%p182) target = $region20
        $region19: #{tpu_custom_call.1} parent=11 // pred_region
          _
        $region20: #{tpu_custom_call.1} parent=11 // pred_fallthru
          _
        // Predicated region
        $region21: #{tpu_custom_call.1} parent=11 // pred_check
          %p185 = pneg %p107
        $region22: #{tpu_custom_call.1} parent=11 // pred_check_branch
          %187 = sbr.rel (%p185) target = $region24
        $region23: #{tpu_custom_call.1} parent=11 // pred_region
          _
        $region24: #{tpu_custom_call.1} parent=11 // pred_fallthru
          _
        // Predicated region
        $region25: #{tpu_custom_call.1} parent=11 // pred_check
          %p188 = pneg %p128
        $region26: #{tpu_custom_call.1} parent=11 // pred_check_branch
          %190 = sbr.rel (%p188) target = $region28
        $region27: #{tpu_custom_call.1} parent=11 // pred_region
          _
        $region28: #{tpu_custom_call.1} parent=11 // pred_fallthru
          _
      $region12: #{tpu_custom_call.1} parent=5 // pred_fallthru
        _
      %p191 = scmp.lt.s32.totalorder %s18, 2
      // Predicated region
      $region29: #{tpu_custom_call.1} parent=5 // pred_check
        %p192 = pneg %p191
      $region30: #{tpu_custom_call.1} parent=5 // pred_check_branch
        %194 = sbr.rel (%p192) target = $region32
      $region31: #{tpu_custom_call.1} parent=5 // pred_region
        // Predicated region
        $region33: #{tpu_custom_call.1} parent=31 // pred_check
          %p195 = pneg %p38
        $region34: #{tpu_custom_call.1} parent=31 // pred_check_branch
          %197 = sbr.rel (%p195) target = $region36
        $region35: #{tpu_custom_call.1} parent=31 // pred_region
          %s198 = sand.u32 %s28, 1
          %s199 = scalar_lea.sflag [#allocation3], %s198
          %s200 = sand.u32 %s28, 1
          %s201 = smul.addr %s200, 8
          %s202 = scalar_lea.vmem [#allocation2], %s201
          %s203 = smul.u32 2, %s18
          %s205 = ssub.s32 128, 128
          %206 = vsyncadd %s199, %s205
          %s207 = smul.addr %s203, 64
          %s208 = scalar_lea.hbm %s0, %s207
          %s209 = sshll.u32 %s202, 4
          %s210 = int_to_ptr.vmem [resolvable:$true] %s209
          %215 = dma.hbm_to_vmem [thread:$0]  %s208, 128, %s210, %s199, 64, 64, 4
        $region36: #{tpu_custom_call.1} parent=31 // pred_fallthru
          _
      $region32: #{tpu_custom_call.1} parent=5 // pred_fallthru
        _
      %p216 = scmp.le.s32.totalorder 1, %s18
      %p217 = scmp.lt.s32.totalorder %s18, 3
      %p218 = pnand %p216, %p217
      %p219 = pneg %p218
      // Predicated region
      $region37: #{tpu_custom_call.1} parent=5 // pred_check
        _
      $region38: #{tpu_custom_call.1} parent=5 // pred_check_branch
        %221 = sbr.rel (%p218) target = $region40
      $region39: #{tpu_custom_call.1} parent=5 // pred_region
        %s222 = ssub.s32 %s18, 1
        %s223 = sand.u32 %s31, 1
        %s224 = scalar_lea.sflag [#allocation3], %s223
        %s225 = sand.u32 %s31, 1
        %s226 = smul.addr %s225, 8
        %s227 = scalar_lea.vmem [#allocation2], %s226
        // Predicated region
        $region41: #{tpu_custom_call.1} parent=39 // pred_check
          %p228 = pneg %p44
        $region42: #{tpu_custom_call.1} parent=39 // pred_check_branch
          %230 = sbr.rel (%p228) target = $region44
        $region43: #{tpu_custom_call.1} parent=39 // pred_region
          %231 = dma.done %s224, 128
        $region44: #{tpu_custom_call.1} parent=39 // pred_fallthru
          _
        // Predicated region
        $region45: #{tpu_custom_call.1} parent=39 // pred_check
          %p232 = pneg %p65
        $region46: #{tpu_custom_call.1} parent=39 // pred_check_branch
          %234 = sbr.rel (%p232) target = $region48
        $region47: #{tpu_custom_call.1} parent=39 // pred_region
          %235 = dma.done [#allocation6], 320
        $region48: #{tpu_custom_call.1} parent=39 // pred_fallthru
          _
        %s236 = sand.u32 %s31, 1
        %s237 = scalar_lea.sflag [#allocation3], %s236
        %s238 = sand.u32 %s31, 1
        %s239 = smul.addr %s238, 8
        %s240 = scalar_lea.vmem [#allocation2], %s239
        %p241 = pneg %p44
        %p242 = pneg %p41
        %p243 = pneg %p65
        %p244 = pneg %p62
        %p245 = pneg %p86
        %p246 = pneg %p83
        %p247 = pneg %p107
        %p248 = pneg %p104
        %p249 = pneg %p128
        %p250 = pneg %p125
        %p251 = pneg %p154
        %p252 = pneg %p151
        %s253 = sand.u32 %s141, 1
        %s254 = scalar_lea.sflag [#allocation4], %s253
        %s255 = sand.u32 %s141, 1
        %s256 = smul.addr %s255, 8
        %s257 = scalar_lea.vmem [#allocation7], %s256
        %s258 = smul.u32 2, %s23
        %s259 = smul.u32 2, %s23
        %v261 = vld [vmem:[%s227] sm:$0xf]
        %v262 = vld [vmem:[%s227 + $0x4] sm:$0xf]
        %v263 = vld [vmem:[#allocation5] sm:$0xf]
        %v264 = vld [vmem:[#allocation5 + $0x4] sm:$0xf]
        %v265 = vld [vmem:[#allocation5 + $0x8] sm:$0xf]
        %v266 = vld [vmem:[#allocation5 + $0xc] sm:$0xf]
        %v267 = vld [vmem:[#allocation5 + $0x10] sm:$0x3]
        %v268 = vld [vmem:[%s2] sm:$0x1]
        %v270 = vlaneseq
        %v271 = vshrl.u32 %v270, 7
        %v272 = vsub.s32 0, %v271
        %v273 = vrot.slane %v268, %v272
        %v277 = vunpack.c.l.b16 %v261
        %v278 = vunpack.c.l.b16 %v262
        %v279 = vpack.c.b16 %v278, %v277
        %v285 = vunpack.c.l.b16 %v263
        %v286 = vunpack.c.l.b16 %v264
        %v287 = vunpack.c.l.b16 %v265
        %v288 = vunpack.c.l.b16 %v266
        %v289 = vunpack.c.l.b16 %v267
        %v290 = vpack.c.b16 %v286, %v285
        %v291 = vpack.c.b16 %v288, %v287
        %v292 = vpack.c.b16 %v289, %v289
        %vm295 = vcmask 293888
        %v297 = vsel %vm295, %v279, 0
        %vm299 = vcmask 1041408
        %v301 = vsel %vm299, %v292, 0
        %303 = vmatprep.subr.bf16.mxu0 0
        %304 = vmatpush1.bf16.msra.mxu0 %v290
        %305 = vmatprep.subr.bf16.mxu0 0
        %306 = vmatpush1.bf16.msra.mxu0 %v291
        %307 = vmatprep.subr.bf16.mxu0 0
        %308 = vmatpush1.bf16.msra.mxu0 %v301
        %309 = vmatprep.subr.bf16.mxu0 0
        %310 = vmatpush1.bf16.msra.mxu0 0
        %311 = vmatprep.subr.bf16.mxu0 0
        %312 = vmatpush1.bf16.msra.mxu0 0
        %313 = vmatprep.subr.bf16.mxu0 0
        %314 = vmatpush1.bf16.msra.mxu0 0
        %315 = vmatprep.subr.bf16.mxu0 0
        %316 = vmatpush1.bf16.msra.mxu0 0
        %317 = vmatprep.subr.bf16.mxu0 0
        %318 = vmatpush1.bf16.msra.mxu0 0
        %319 = vmatprep.subr.bf16.mxu0 0
        %320 = vmatpush1.bf16.msra.mxu0 0
        %321 = vmatprep.subr.bf16.mxu0 0
        %322 = vmatpush1.bf16.msra.mxu0 0
        %323 = vmatprep.subr.bf16.mxu0 0
        %324 = vmatpush1.bf16.msra.mxu0 0
        %325 = vmatprep.subr.bf16.mxu0 0
        %326 = vmatpush1.bf16.msra.mxu0 0
        %327 = vmatprep.subr.bf16.mxu0 0
        %328 = vmatpush1.bf16.msra.mxu0 0
        %329 = vmatprep.subr.bf16.mxu0 0
        %330 = vmatpush1.bf16.msra.mxu0 0
        %331 = vmatprep.subr.bf16.mxu0 0
        %332 = vmatpush1.bf16.msra.mxu0 0
        %333 = vmatprep.subr.bf16.mxu0 0
        %334 = vmatpush1.bf16.msra.mxu0 0
        %335 = vmatprep.mubr.bf16.mxu0 0
        %336 = vmatmul.mubr.bf16.gmra.mrb[0].mxu0 %v297
        %v337 = vpop.f32.mrb[0].mxu0
        %v338 = vadd.f32 %v273, %v337
        %v339 = vpop.f32.mrb[0].mxu0
        %v340 = vpop.f32.mrb[0].mxu0
        %v341 = vadd.f32 %v273, %v340
        %v342 = vpop.f32.mrb[0].mxu0
        %343 = vdwg.mxu0
        %344 = vadd.xlane.f32.xlu0 %v338
        %v345 = vpop.xlane.xlu0 %344
        %346 = vadd.xlane.f32.xlu0 %v341
        %v347 = vpop.xlane.xlu0 %346
        %v348 = vmul.f32 %v338, %v338
        %v349 = vmul.f32 %v341, %v341
        %350 = vadd.xlane.f32.xlu0 %v348
        %v351 = vpop.xlane.xlu0 %350
        %352 = vadd.xlane.f32.xlu0 %v349
        %v353 = vpop.xlane.xlu0 %352
        %v354 = vmul.f32 %v345, 0.0078125
        %v355 = vmul.f32 %v347, 0.0078125
        %v356 = vmul.f32 %v351, 0.0078125
        %v357 = vmul.f32 %v353, 0.0078125
        %v358 = vmul.f32 %v354, %v354
        %v359 = vmul.f32 %v355, %v355
        %v360 = vsub.f32 %v356, %v358
        %v361 = vsub.f32 %v357, %v359
        %v362 = vadd.f32 %v360, 1e-05
        %v363 = vadd.f32 %v361, 1e-05
        %v364 = vrsqrt.pop %v362
        %v365 = vrsqrt.pop %v363
        %v366 = vld [vmem:[%s3] sm:$0x1]
        %v368 = vlaneseq
        %v369 = vshrl.u32 %v368, 7
        %v370 = vsub.s32 0, %v369
        %v371 = vrot.slane %v366, %v370
        %v373 = vmul.f32 %v364, %v371
        %v374 = vmul.f32 %v365, %v371
        %v375 = vsub.f32 %v338, %v354
        %v376 = vsub.f32 %v341, %v355
        %v377 = vmul.f32 %v375, %v373
        %v378 = vmul.f32 %v376, %v374
        %v379 = vld [vmem:[%s4] sm:$0x1]
        %v381 = vlaneseq
        %v382 = vshrl.u32 %v381, 7
        %v383 = vsub.s32 0, %v382
        %v384 = vrot.slane %v379, %v383
        %v386 = vadd.f32 %v377, %v384
        %v387 = vadd.f32 %v378, %v384
        %v388 = vpack.c.bf16 %v387, %v386
        %v390 = vunpack.c.l.b16 %v388
        %v391 = vunpack.c.h.b16 %v388
        %v392 = vpack.c.b16 %v390, %v390
        %v393 = vpack.c.b16 %v391, %v391
        %396 = vst [vmem:[%s257] sm:$0xf] %v392
        %397 = vst [vmem:[%s257 + $0x4] sm:$0xf] %v393
        %s398 = sand.u32 %s141, 1
        %s399 = scalar_lea.sflag [#allocation4], %s398
        %s400 = sand.u32 %s141, 1
        %s401 = smul.addr %s400, 8
        %s402 = scalar_lea.vmem [#allocation7], %s401
        // Predicated region
        $region49: #{tpu_custom_call.1} parent=39 // pred_check
          %p403 = pneg %p151
        $region50: #{tpu_custom_call.1} parent=39 // pred_check_branch
          %405 = sbr.rel (%p403) target = $region52
        $region51: #{tpu_custom_call.1} parent=39 // pred_region
          %s406 = smul.u32 2, %s23
          %s408 = ssub.s32 128, 128
          %409 = vsyncadd %s399, %s408
          %s410 = smul.addr %s406, 64
          %s411 = scalar_lea.hbm %s5, %s410
          %s412 = sshll.u32 %s402, 4
          %s413 = int_to_ptr.vmem [resolvable:$true] %s412
          %418 = dma.vmem_to_hbm [thread:$0]  %s413, 128, %s411, %s399, 64, 64, 4
        $region52: #{tpu_custom_call.1} parent=39 // pred_fallthru
          _
      $region40: #{tpu_custom_call.1} parent=5 // pred_fallthru
        _
      %p419 = scmp.le.s32.totalorder 2, %s18
      // Predicated region
      $region53: #{tpu_custom_call.1} parent=5 // pred_check
        %p420 = pneg %p419
      $region54: #{tpu_custom_call.1} parent=5 // pred_check_branch
        %422 = sbr.rel (%p420) target = $region56
      $region55: #{tpu_custom_call.1} parent=5 // pred_region
        %s423 = ssub.s32 %s18, 2
        // Predicated region
        $region57: #{tpu_custom_call.1} parent=55 // pred_check
          %p424 = pneg %p157
        $region58: #{tpu_custom_call.1} parent=55 // pred_check_branch
          %426 = sbr.rel (%p424) target = $region60
        $region59: #{tpu_custom_call.1} parent=55 // pred_region
          %s427 = sand.u32 %s142, 1
          %s428 = scalar_lea.sflag [#allocation4], %s427
          %s429 = sand.u32 %s142, 1
          %s430 = smul.addr %s429, 8
          %s431 = scalar_lea.vmem [#allocation7], %s430
          %432 = dma.done %s428, 128
        $region60: #{tpu_custom_call.1} parent=55 // pred_fallthru
          _
      $region56: #{tpu_custom_call.1} parent=5 // pred_fallthru
        _
    $region6: #{tpu_custom_call.1} parent=1 // loop_footer
      %s22 = sadd.s32 1, %s18
    $region7: #{tpu_custom_call.1} parent=1 // loop_footer_branch
      %17 = sbr.rel target = $region3
    $region8: #{tpu_custom_call.1} parent=1 // loop_exit
      _
    %433 = vsyncpa [#allocation3], 1
    %s434 = scalar_lea.sflag [#allocation3], 1
    %435 = vsyncpa %s434, 1
    %436 = vsyncpa [#allocation6], 1
    %437 = vsyncpa [#allocation4], 1
    %s438 = scalar_lea.sflag [#allocation4], 1
    %439 = vsyncpa %s438, 1

</llo_original>
